<compile_context>
chip_gen: v7x
topology: tpu7x:2x2x1
jax: 0.10.0
libtpu: 0.0.40
codegen_flags: <defaults>
</compile_context>

<pallas_src>
import jax
import jax.numpy as jnp
from jax.experimental import pallas as pl
from jax.experimental.pallas import tpu as pltpu


_LANE = 128
_SUBLANE = 8
# Conservative scoped-VMEM cap that is legal on every generation
# (v7x: 64 MiB physical; v5e/v6e: 128 MiB physical).
_VMEM_LIMIT = 48 * 1024 * 1024


def _round_up(x, m):
    return ((x + m - 1) // m) * m


def _cdiv(a, b):
    return (a + b - 1) // b


# ----------------------------------------------------------------------------- kernels


def _head_kernel_fused_k(inv_t_ref, x_ref, w_ref, b_ref, o_ref):
    # Whole K (feature) dim folded into the block: one MXU pass per (M, N) tile,
    # no accumulator scratch, no init/finalize branches.
    #   inv_t_ref: SMEM (1, 1) f32  -- exact 1/temperature
    #   x_ref:     VMEM (tm, Fp) bf16 activations
    #   w_ref:     VMEM (Fp, tn) bf16 classifier weight
    #   b_ref:     VMEM (1, tn)  f32  bias
    #   o_ref:     VMEM (tm, tn) f32  temperature-scaled logits
    acc = jnp.dot(x_ref[...], w_ref[...], preferred_element_type=jnp.float32)
    o_ref[...] = ((acc + b_ref[...]) * inv_t_ref[0, 0]).astype(o_ref.dtype)


def _head_kernel_tiled_k(inv_t_ref, x_ref, w_ref, b_ref, o_ref):
    # Fallback for very large feature dims: K-reduction over grid axis 2,
    # accumulating directly into the resident f32 output block (no VMEM scratch).
    k = pl.program_id(2)

    @pl.when(k == 0)
    def _init():
        o_ref[...] = jnp.zeros_like(o_ref)

    o_ref[...] += jnp.dot(x_ref[...], w_ref[...], preferred_element_type=jnp.float32)

    @pl.when(k == pl.num_programs(2) - 1)
    def _finalize():
        o_ref[...] = (o_ref[...] + b_ref[...]) * inv_t_ref[0, 0]


# ----------------------------------------------------------------------------- wrapper


def prepare_temperature_head(weight, bias, temperature, *, tn=256, tk=512):
    """One-time parameter preprocessing, hoisted out of the forward path.

    weight: [F, N] f32, bias: [N] f32, temperature: scalar / shape-(1,) f32.
    Pads + casts the weight to a lane/tile-aligned bf16 [Fp, Np] layout, the bias
    to f32 [1, Np], and precomputes the exact 1/temperature scalar for SMEM.
    """
    F, N = weight.shape
    n_lane = _round_up(N, _LANE)

    tn = min(tn, n_lane)
    # Keep >= 2 lane-dense N tiles when the class count allows it, so both v7x
    # TensorCores get parallel work even when there is a single M tile.
    if n_lane // tn < 2 and n_lane // _LANE >= 2:
        tn = _LANE
    Np = _round_up(N, tn)

    # Fold the whole feature dim into the block when it comfortably fits VMEM
    # (removes the K grid axis, the accumulator and the init/finalize branches).
    Fp_fold = _round_up(F, _LANE)
    fold_bytes = 2 * (256 * Fp_fold * 2 + Fp_fold * tn * 2 + tn * 4 + 256 * tn * 4)
    fold_k = (F <= 8192) and (fold_bytes <= _VMEM_LIMIT // 2)

    if fold_k:
        Fp = Fp_fold
        tk = Fp
    else:
        tk = min(_round_up(tk, _LANE), _round_up(F, _LANE))
        Fp = _round_up(F, tk)

    w_p = jnp.zeros((Fp, Np), jnp.bfloat16).at[:F, :N].set(weight.astype(jnp.bfloat16))
    b_p = jnp.zeros((1, Np), jnp.float32).at[0, :N].set(bias.astype(jnp.float32))
    inv_t = (1.0 / jnp.asarray(temperature, jnp.float32)).reshape(1, 1)

    return dict(w_p=w_p, b_p=b_p, inv_t=inv_t,
                F=F, N=N, Fp=Fp, Np=Np, tn=tn, tk=tk, fold_k=fold_k)


def model_with_temperature_forward(x_nchw, head):
    """ModelWithTemperature.forward: classifier logits scaled by 1/temperature.

    x_nchw: [B, C, H, W] f32 with C*H*W == head['F'].  Returns [B, N] f32.
    """
    B = x_nchw.shape[0]
    F, N = head["F"], head["N"]
    Fp, Np, tn = head["Fp"], head["Np"], head["tn"]
    w_p, b_p, inv_t = head["w_p"], head["b_p"], head["inv_t"]

    x_flat = x_nchw.reshape(B, -1)
    assert x_flat.shape[1] == F, "feature dim mismatch vs prepared weight"

    # M tiling: minimize padding (e.g. B=264 -> tm=136, Bp=272, not Bp=512).
    m_splits = max(1, _cdiv(B, 256))
    tm = _round_up(_cdiv(B, m_splits), _SUBLANE)
    Bp = _round_up(B, tm)
    grid_m = Bp // tm
    n_tiles = Np // tn

    # Activations: flatten, bf16, zero-pad to the tile grid (cheap -- the weight
    # padding was hoisted out; activations are the small per-call operand).
    x_p = jnp.zeros((Bp, Fp), jnp.bfloat16)
    x_p = x_p.at[:B, :F].set(x_flat.astype(jnp.bfloat16))

    cost = pl.CostEstimate(
        flops=2 * B * F * N,
        transcendentals=0,
        bytes_accessed=B * F * 2 + F * N * 2 + N * 4 + B * N * 4,
    )

    if head["fold_k"]:
        if Fp * Np >= Bp * Fp:
            # Weight is the larger operand: keep its block index constant across
            # the inner (M) axis, so its DMA is skipped between inner steps and
            # the weight is streamed from HBM exactly once per forward.
            grid = (n_tiles, grid_m)
            x_spec = pl.BlockSpec((tm, Fp), lambda j, i: (i, 0))
            w_spec = pl.BlockSpec((Fp, tn), lambda j, i: (0, j))
            b_spec = pl.BlockSpec((1, tn), lambda j, i: (0, j))
            o_spec = pl.BlockSpec((tm, tn), lambda j, i: (i, j))
        else:
            # Activations larger: keep them resident across the inner (N) axis.
            grid = (grid_m, n_tiles)
            x_spec = pl.BlockSpec((tm, Fp), lambda i, j: (i, 0))
            w_spec = pl.BlockSpec((Fp, tn), lambda i, j: (0, j))
            b_spec = pl.BlockSpec((1, tn), lambda i, j: (0, j))
            o_spec = pl.BlockSpec((tm, tn), lambda i, j: (i, j))
        kernel = _head_kernel_fused_k
        dims = ("parallel", "parallel")
    else:
        tk = head["tk"]
        grid = (grid_m, n_tiles, Fp // tk)
        x_spec = pl.BlockSpec((tm, tk), lambda i, j, k: (i, k))
        w_spec = pl.BlockSpec((tk, tn), lambda i, j, k: (k, j))
        b_spec = pl.BlockSpec((1, tn), lambda i, j, k: (0, j))
        o_spec = pl.BlockSpec((tm, tn), lambda i, j, k: (i, j))
        kernel = _head_kernel_tiled_k
        dims = ("parallel", "parallel", "arbitrary")

    out = pl.pallas_call(
        kernel,
        out_shape=jax.ShapeDtypeStruct((Bp, Np), jnp.float32),
        grid_spec=pltpu.PrefetchScalarGridSpec(
            num_scalar_prefetch=0,
            grid=grid,
            in_specs=[
                pl.BlockSpec(memory_space=pltpu.MemorySpace.SMEM),  # 1/temperature
                x_spec,   # activations (bf16)
                w_spec,   # classifier weight (bf16, pre-padded)
                b_spec,   # bias (f32)
            ],
            out_specs=o_spec,
        ),
        compiler_params=pltpu.CompilerParams(
            dimension_semantics=dims,
            vmem_limit_bytes=_VMEM_LIMIT,
        ),
        cost_estimate=cost,
    )(inv_t, x_p, w_p, b_p)

    return out[:B, :N]


if __name__ == "__main__":
    # Small shapes consistent with the module: NCHW image input, class logits output.
    B, C, H, W = 2, 4, 16, 16
    NUM_CLASSES = 128
    FEAT = C * H * W

    key = jax.random.PRNGKey(0)
    kx, kw, kb = jax.random.split(key, 3)

    x = jax.random.normal(kx, (B, C, H, W), dtype=jnp.float32)
    weight = jax.random.normal(kw, (FEAT, NUM_CLASSES), dtype=jnp.float32) * 0.02
    bias = jax.random.normal(kb, (NUM_CLASSES,), dtype=jnp.float32) * 0.01
    temperature = jnp.ones((1,), jnp.float32) * 1.5  # nn.Parameter(torch.ones(1) * 1.5)

    # One-time parameter preprocessing (hoisted out of the per-call forward path).
    head = prepare_temperature_head(weight, bias, temperature)

    out = model_with_temperature_forward(x, head)
    out = jax.block_until_ready(out)

    # Reference in plain JAX using the same bf16-cast matmul operands (f32 accumulate):
    # logits / temperature.
    xb = x.reshape(B, FEAT).astype(jnp.bfloat16).astype(jnp.float32)
    wb = weight.astype(jnp.bfloat16).astype(jnp.float32)
    ref = (xb @ wb + bias[None, :]) / temperature[0]

    assert out.shape == (B, NUM_CLASSES)
    assert jnp.allclose(out, ref, rtol=1e-2, atol=1e-2), "mismatch vs reference"

    print("KERNEL_OK")
</pallas_src>

<mosaic_0001>
module attributes {stable_mosaic.version = 11 : i64} {
  func.func @_head_kernel_fused_k(%arg0: i32, %arg1: i32, %arg2: memref<1x1xf32, #tpu.memory_space<smem>>, %arg3: memref<8x1024xbf16, #tpu.memory_space<vmem>>, %arg4: memref<1024x128xbf16, #tpu.memory_space<vmem>>, %arg5: memref<1x128xf32, #tpu.memory_space<vmem>>, %arg6: memref<8x128xf32, #tpu.memory_space<vmem>>) attributes {dimension_semantics = [#tpu.dimension_semantics<parallel>, #tpu.dimension_semantics<parallel>], iteration_bounds = array<i64: 1, 1>, scalar_prefetch = 0 : i64, scratch_operands = 0 : i64, tpu.core_type = #tpu.core_type<tc>, window_params = [{transform_indices = @transform_0, window_bounds = array<i64: 1, 1>}, {transform_indices = @transform_1, window_bounds = array<i64: 8, 1024>}, {transform_indices = @transform_2, window_bounds = array<i64: 1024, 128>}, {transform_indices = @transform_3, window_bounds = array<i64: 1, 128>}, {transform_indices = @transform_4, window_bounds = array<i64: 8, 128>}]} {
    %c0 = arith.constant 0 : index
    %c0_0 = arith.constant 0 : index
    %0 = vector.load %arg3[%c0, %c0_0] : memref<8x1024xbf16, #tpu.memory_space<vmem>>, vector<8x1024xbf16>
    %c0_1 = arith.constant 0 : index
    %c0_2 = arith.constant 0 : index
    %1 = vector.load %arg4[%c0_1, %c0_2] : memref<1024x128xbf16, #tpu.memory_space<vmem>>, vector<1024x128xbf16>
    %cst = arith.constant dense<0.000000e+00> : vector<8x128xf32>
    %2 = tpu.matmul %0, %1, %cst {dimension_numbers = #tpu.dot_dimension_numbers<[1], [0], [0], [1], [0, 0, 1, 1], [], []>} : vector<8x1024xbf16>, vector<1024x128xbf16>, vector<8x128xf32> -> vector<8x128xf32>
    %c0_3 = arith.constant 0 : index
    %c0_4 = arith.constant 0 : index
    %3 = vector.load %arg5[%c0_3, %c0_4] : memref<1x128xf32, #tpu.memory_space<vmem>>, vector<1x128xf32>
    %4 = vector.broadcast %3 : vector<1x128xf32> to vector<8x128xf32>
    %5 = arith.addf %2, %4 : vector<8x128xf32>
    %c0_5 = arith.constant 0 : index
    %c0_6 = arith.constant 0 : index
    %6 = memref.load %arg2[%c0_5, %c0_6] : memref<1x1xf32, #tpu.memory_space<smem>>
    %7 = vector.broadcast %6 : f32 to vector<8x128xf32>
    %8 = arith.mulf %5, %7 : vector<8x128xf32>
    %c0_7 = arith.constant 0 : index
    %c0_8 = arith.constant 0 : index
    %9 = vector.load %arg6[%c0_7, %c0_8] : memref<8x128xf32, #tpu.memory_space<vmem>>, vector<8x128xf32>
    tpu.vector_store %arg6[%c0_7, %c0_8], %8 {strides = array<i32>} : memref<8x128xf32, #tpu.memory_space<vmem>>, vector<8x128xf32>,
    return
  }
  func.func @transform_0(%arg0: i32, %arg1: i32) -> (i32, i32) {
    %c0_i32 = arith.constant 0 : i32
    %c0_i32_0 = arith.constant 0 : i32
    %c0_i32_1 = arith.constant 0 : i32
    return %c0_i32, %c0_i32_0 : i32, i32
  }
  func.func @transform_1(%arg0: i32, %arg1: i32) -> (i32, i32) {
    %c0_i32 = arith.constant 0 : i32
    %c0_i32_0 = arith.constant 0 : i32
    return %arg1, %c0_i32 : i32, i32
  }
  func.func @transform_2(%arg0: i32, %arg1: i32) -> (i32, i32) {
    %c0_i32 = arith.constant 0 : i32
    %c0_i32_0 = arith.constant 0 : i32
    return %c0_i32, %arg0 : i32, i32
  }
  func.func @transform_3(%arg0: i32, %arg1: i32) -> (i32, i32) {
    %c0_i32 = arith.constant 0 : i32
    %c0_i32_0 = arith.constant 0 : i32
    return %c0_i32, %arg0 : i32, i32
  }
  func.func @transform_4(%arg0: i32, %arg1: i32) -> (i32, i32) {
    %c0_i32 = arith.constant 0 : i32
    return %arg1, %arg0 : i32, i32
  }
}

</mosaic_0001>

<llo_original>
// kernel: tpu_custom_call.1
$region0: #{tpu_custom_call.1}
  #allocation0 [shape = 'u32[]', space=smem, size = 0x4, offset = 0x4, fixed_abs, tag = 'smem constant byte address 0x4 - core index']
  #allocation1 [shape = 'u32[144,128]{1,0:T(1,128)}', space=vmem, size = 0x12000, scoped, tag = 'internal scratch']
  #allocation2 [shape = 'f32[1,1]{1,0:T(1,128)S(6)}', space=smem, size = 0x200, scoped, tag = 'scoped memory for tpu_custom_call.1']
  %s0 = inlined_call_operand.<no memory space> [shape: f32[1,1], index: 0, kind: input, shape index: {}]
  %s1 = inlined_call_operand.hbm [shape: bf16[8,1024], index: 1, kind: input, shape index: {}]
  %s2 = inlined_call_operand.hbm [shape: bf16[1024,128], index: 2, kind: input, shape index: {}]
  %s3 = inlined_call_operand.vmem [shape: f32[1,128], index: 3, kind: input, shape index: {}]
  %s4 = inlined_call_operand.hbm [shape: f32[8,128], index: 4, kind: output, shape index: {}]
  %s5 = sld [smem:[#allocation0]]
  $region34: #{tpu_custom_call.1} parent=0
    _
  %s7 = ssub.s32 1, %s5
  %s8 = scalar_select 0, %s7, %s5
  %9 = sst [smem:[#allocation2]] %s0
  $region1: #{tpu_custom_call.1} parent=0
    #allocation3 [shape = 'u8[16384]{0}', space=vmem, size = 0x4000, scoped, tag = 'input window, operand 1, single buffered']
    #allocation4 [shape = 's32[1]{0}', space=sflag, size = 0x4, scoped, tag = 'scoped memory for tpu_custom_call.1']
    #allocation5 [shape = 's32[1]{0}', space=sflag, size = 0x4, scoped, tag = 'scoped memory for tpu_custom_call.1']
    #allocation6 [shape = 'u8[262144]{0}', space=vmem, size = 0x40000, scoped, tag = 'input window, operand 2, single buffered']
    #allocation7 [shape = 's32[1]{0}', space=sflag, size = 0x4, scoped, tag = 'scoped memory for tpu_custom_call.1']
    #allocation8 [shape = 'u8[4096]{0}', space=vmem, size = 0x1000, scoped, tag = 'output window, operand 0, single buffered']
    %10 = vsyncpa [#allocation4], 0
    %11 = vsyncpa [#allocation7], 0
    %12 = vsyncpa [#allocation5], 0
    // Predicated region
    $region2: #{tpu_custom_call.1} parent=1 // pred_check
      _
    $region3: #{tpu_custom_call.1} parent=1 // pred_check_branch
      %14 = sbr.rel (0) target = $region5
    $region4: #{tpu_custom_call.1} parent=1 // pred_region
      _
    $region5: #{tpu_custom_call.1} parent=1 // pred_fallthru
      _
    // Predicated region
    $region6: #{tpu_custom_call.1} parent=1 // pred_check
      _
    $region7: #{tpu_custom_call.1} parent=1 // pred_check_branch
      %16 = sbr.rel (0) target = $region9
    $region8: #{tpu_custom_call.1} parent=1 // pred_region
      %s18 = ssub.s32 512, 512
      %19 = vsyncadd [#allocation4], %s18
      %s21 = sshll.u32 [#allocation3], 4
      %s22 = int_to_ptr.vmem [resolvable:$true] %s21
      %24 = dma.hbm_to_vmem [thread:$0]  %s1, 512, %s22, [#allocation4]
    $region9: #{tpu_custom_call.1} parent=1 // pred_fallthru
      _
    // Predicated region
    $region10: #{tpu_custom_call.1} parent=1 // pred_check
      _
    $region11: #{tpu_custom_call.1} parent=1 // pred_check_branch
      %26 = sbr.rel (0) target = $region13
    $region12: #{tpu_custom_call.1} parent=1 // pred_region
      %s28 = ssub.s32 8192, 8192
      %29 = vsyncadd [#allocation7], %s28
      %s30 = sshll.u32 [#allocation6], 4
      %s31 = int_to_ptr.vmem [resolvable:$true] %s30
      %36 = dma.hbm_to_vmem [thread:$0]  %s2, 8192, %s31, [#allocation7], 64, 64, 4
    $region13: #{tpu_custom_call.1} parent=1 // pred_fallthru
      _
    // Predicated region
    $region14: #{tpu_custom_call.1} parent=1 // pred_check
      _
    $region15: #{tpu_custom_call.1} parent=1 // pred_check_branch
      %38 = sbr.rel (0) target = $region17
    $region16: #{tpu_custom_call.1} parent=1 // pred_region
      _
    $region17: #{tpu_custom_call.1} parent=1 // pred_fallthru
      _
    // Predicated region
    $region18: #{tpu_custom_call.1} parent=1 // pred_check
      _
    $region19: #{tpu_custom_call.1} parent=1 // pred_check_branch
      %40 = sbr.rel (0) target = $region21
    $region20: #{tpu_custom_call.1} parent=1 // pred_region
      %41 = dma.done [#allocation4], 512
    $region21: #{tpu_custom_call.1} parent=1 // pred_fallthru
      _
    // Predicated region
    $region22: #{tpu_custom_call.1} parent=1 // pred_check
      _
    $region23: #{tpu_custom_call.1} parent=1 // pred_check_branch
      %43 = sbr.rel (0) target = $region25
    $region24: #{tpu_custom_call.1} parent=1 // pred_region
      %44 = dma.done [#allocation7], 8192
    $region25: #{tpu_custom_call.1} parent=1 // pred_fallthru
      _
    %v46 = vld [vmem:[#allocation3] sm:$0xff]
    %v47 = vld [vmem:[#allocation3 + $0x8] sm:$0xff]
    %v48 = vld [vmem:[#allocation3 + $0x10] sm:$0xff]
    %v49 = vld [vmem:[#allocation3 + $0x18] sm:$0xff]
    %v50 = vld [vmem:[#allocation6] sm:$0xf]
    %v51 = vld [vmem:[#allocation6 + $0x4] sm:$0xf]
    %v52 = vld [vmem:[#allocation6 + $0x8] sm:$0xf]
    %v53 = vld [vmem:[#allocation6 + $0xc] sm:$0xf]
    %v54 = vld [vmem:[#allocation6 + $0x10] sm:$0xf]
    %v55 = vld [vmem:[#allocation6 + $0x14] sm:$0xf]
    %v56 = vld [vmem:[#allocation6 + $0x18] sm:$0xf]
    %v57 = vld [vmem:[#allocation6 + $0x1c] sm:$0xf]
    %v58 = vld [vmem:[#allocation6 + $0x20] sm:$0xf]
    %v59 = vld [vmem:[#allocation6 + $0x24] sm:$0xf]
    %v60 = vld [vmem:[#allocation6 + $0x28] sm:$0xf]
    %v61 = vld [vmem:[#allocation6 + $0x2c] sm:$0xf]
    %v62 = vld [vmem:[#allocation6 + $0x30] sm:$0xf]
    %v63 = vld [vmem:[#allocation6 + $0x34] sm:$0xf]
    %v64 = vld [vmem:[#allocation6 + $0x38] sm:$0xf]
    %v65 = vld [vmem:[#allocation6 + $0x3c] sm:$0xf]
    %v66 = vld [vmem:[#allocation6 + $0x40] sm:$0xf]
    %v67 = vld [vmem:[#allocation6 + $0x44] sm:$0xf]
    %v68 = vld [vmem:[#allocation6 + $0x48] sm:$0xf]
    %v69 = vld [vmem:[#allocation6 + $0x4c] sm:$0xf]
    %v70 = vld [vmem:[#allocation6 + $0x50] sm:$0xf]
    %v71 = vld [vmem:[#allocation6 + $0x54] sm:$0xf]
    %v72 = vld [vmem:[#allocation6 + $0x58] sm:$0xf]
    %v73 = vld [vmem:[#allocation6 + $0x5c] sm:$0xf]
    %v74 = vld [vmem:[#allocation6 + $0x60] sm:$0xf]
    %v75 = vld [vmem:[#allocation6 + $0x64] sm:$0xf]
    %v76 = vld [vmem:[#allocation6 + $0x68] sm:$0xf]
    %v77 = vld [vmem:[#allocation6 + $0x6c] sm:$0xf]
    %v78 = vld [vmem:[#allocation6 + $0x70] sm:$0xf]
    %v79 = vld [vmem:[#allocation6 + $0x74] sm:$0xf]
    %v80 = vld [vmem:[#allocation6 + $0x78] sm:$0xf]
    %v81 = vld [vmem:[#allocation6 + $0x7c] sm:$0xf]
    %v82 = vld [vmem:[#allocation6 + $0x80] sm:$0xf]
    %v83 = vld [vmem:[#allocation6 + $0x84] sm:$0xf]
    %v84 = vld [vmem:[#allocation6 + $0x88] sm:$0xf]
    %v85 = vld [vmem:[#allocation6 + $0x8c] sm:$0xf]
    %v86 = vld [vmem:[#allocation6 + $0x90] sm:$0xf]
    %v87 = vld [vmem:[#allocation6 + $0x94] sm:$0xf]
    %v88 = vld [vmem:[#allocation6 + $0x98] sm:$0xf]
    %v89 = vld [vmem:[#allocation6 + $0x9c] sm:$0xf]
    %v90 = vld [vmem:[#allocation6 + $0xa0] sm:$0xf]
    %v91 = vld [vmem:[#allocation6 + $0xa4] sm:$0xf]
    %v92 = vld [vmem:[#allocation6 + $0xa8] sm:$0xf]
    %v93 = vld [vmem:[#allocation6 + $0xac] sm:$0xf]
    %v94 = vld [vmem:[#allocation6 + $0xb0] sm:$0xf]
    %v95 = vld [vmem:[#allocation6 + $0xb4] sm:$0xf]
    %v96 = vld [vmem:[#allocation6 + $0xb8] sm:$0xf]
    %v97 = vld [vmem:[#allocation6 + $0xbc] sm:$0xf]
    %v98 = vld [vmem:[#allocation6 + $0xc0] sm:$0xf]
    %v99 = vld [vmem:[#allocation6 + $0xc4] sm:$0xf]
    %v100 = vld [vmem:[#allocation6 + $0xc8] sm:$0xf]
    %v101 = vld [vmem:[#allocation6 + $0xcc] sm:$0xf]
    %v102 = vld [vmem:[#allocation6 + $0xd0] sm:$0xf]
    %v103 = vld [vmem:[#allocation6 + $0xd4] sm:$0xf]
    %v104 = vld [vmem:[#allocation6 + $0xd8] sm:$0xf]
    %v105 = vld [vmem:[#allocation6 + $0xdc] sm:$0xf]
    %v106 = vld [vmem:[#allocation6 + $0xe0] sm:$0xf]
    %v107 = vld [vmem:[#allocation6 + $0xe4] sm:$0xf]
    %v108 = vld [vmem:[#allocation6 + $0xe8] sm:$0xf]
    %v109 = vld [vmem:[#allocation6 + $0xec] sm:$0xf]
    %v110 = vld [vmem:[#allocation6 + $0xf0] sm:$0xf]
    %v111 = vld [vmem:[#allocation6 + $0xf4] sm:$0xf]
    %v112 = vld [vmem:[#allocation6 + $0xf8] sm:$0xf]
    %v113 = vld [vmem:[#allocation6 + $0xfc] sm:$0xf]
    %v114 = vld [vmem:[#allocation6 + $0x100] sm:$0xf]
    %v115 = vld [vmem:[#allocation6 + $0x104] sm:$0xf]
    %v116 = vld [vmem:[#allocation6 + $0x108] sm:$0xf]
    %v117 = vld [vmem:[#allocation6 + $0x10c] sm:$0xf]
    %v118 = vld [vmem:[#allocation6 + $0x110] sm:$0xf]
    %v119 = vld [vmem:[#allocation6 + $0x114] sm:$0xf]
    %v120 = vld [vmem:[#allocation6 + $0x118] sm:$0xf]
    %v121 = vld [vmem:[#allocation6 + $0x11c] sm:$0xf]
    %v122 = vld [vmem:[#allocation6 + $0x120] sm:$0xf]
    %v123 = vld [vmem:[#allocation6 + $0x124] sm:$0xf]
    %v124 = vld [vmem:[#allocation6 + $0x128] sm:$0xf]
    %v125 = vld [vmem:[#allocation6 + $0x12c] sm:$0xf]
    %v126 = vld [vmem:[#allocation6 + $0x130] sm:$0xf]
    %v127 = vld [vmem:[#allocation6 + $0x134] sm:$0xf]
    %v128 = vld [vmem:[#allocation6 + $0x138] sm:$0xf]
    %v129 = vld [vmem:[#allocation6 + $0x13c] sm:$0xf]
    %v130 = vld [vmem:[#allocation6 + $0x140] sm:$0xf]
    %v131 = vld [vmem:[#allocation6 + $0x144] sm:$0xf]
    %v132 = vld [vmem:[#allocation6 + $0x148] sm:$0xf]
    %v133 = vld [vmem:[#allocation6 + $0x14c] sm:$0xf]
    %v134 = vld [vmem:[#allocation6 + $0x150] sm:$0xf]
    %v135 = vld [vmem:[#allocation6 + $0x154] sm:$0xf]
    %v136 = vld [vmem:[#allocation6 + $0x158] sm:$0xf]
    %v137 = vld [vmem:[#allocation6 + $0x15c] sm:$0xf]
    %v138 = vld [vmem:[#allocation6 + $0x160] sm:$0xf]
    %v139 = vld [vmem:[#allocation6 + $0x164] sm:$0xf]
    %v140 = vld [vmem:[#allocation6 + $0x168] sm:$0xf]
    %v141 = vld [vmem:[#allocation6 + $0x16c] sm:$0xf]
    %v142 = vld [vmem:[#allocation6 + $0x170] sm:$0xf]
    %v143 = vld [vmem:[#allocation6 + $0x174] sm:$0xf]
    %v144 = vld [vmem:[#allocation6 + $0x178] sm:$0xf]
    %v145 = vld [vmem:[#allocation6 + $0x17c] sm:$0xf]
    %v146 = vld [vmem:[#allocation6 + $0x180] sm:$0xf]
    %v147 = vld [vmem:[#allocation6 + $0x184] sm:$0xf]
    %v148 = vld [vmem:[#allocation6 + $0x188] sm:$0xf]
    %v149 = vld [vmem:[#allocation6 + $0x18c] sm:$0xf]
    %v150 = vld [vmem:[#allocation6 + $0x190] sm:$0xf]
    %v151 = vld [vmem:[#allocation6 + $0x194] sm:$0xf]
    %v152 = vld [vmem:[#allocation6 + $0x198] sm:$0xf]
    %v153 = vld [vmem:[#allocation6 + $0x19c] sm:$0xf]
    %v154 = vld [vmem:[#allocation6 + $0x1a0] sm:$0xf]
    %v155 = vld [vmem:[#allocation6 + $0x1a4] sm:$0xf]
    %v156 = vld [vmem:[#allocation6 + $0x1a8] sm:$0xf]
    %v157 = vld [vmem:[#allocation6 + $0x1ac] sm:$0xf]
    %v158 = vld [vmem:[#allocation6 + $0x1b0] sm:$0xf]
    %v159 = vld [vmem:[#allocation6 + $0x1b4] sm:$0xf]
    %v160 = vld [vmem:[#allocation6 + $0x1b8] sm:$0xf]
    %v161 = vld [vmem:[#allocation6 + $0x1bc] sm:$0xf]
    %v162 = vld [vmem:[#allocation6 + $0x1c0] sm:$0xf]
    %v163 = vld [vmem:[#allocation6 + $0x1c4] sm:$0xf]
    %v164 = vld [vmem:[#allocation6 + $0x1c8] sm:$0xf]
    %v165 = vld [vmem:[#allocation6 + $0x1cc] sm:$0xf]
    %v166 = vld [vmem:[#allocation6 + $0x1d0] sm:$0xf]
    %v167 = vld [vmem:[#allocation6 + $0x1d4] sm:$0xf]
    %v168 = vld [vmem:[#allocation6 + $0x1d8] sm:$0xf]
    %v169 = vld [vmem:[#allocation6 + $0x1dc] sm:$0xf]
    %v170 = vld [vmem:[#allocation6 + $0x1e0] sm:$0xf]
    %v171 = vld [vmem:[#allocation6 + $0x1e4] sm:$0xf]
    %v172 = vld [vmem:[#allocation6 + $0x1e8] sm:$0xf]
    %v173 = vld [vmem:[#allocation6 + $0x1ec] sm:$0xf]
    %v174 = vld [vmem:[#allocation6 + $0x1f0] sm:$0xf]
    %v175 = vld [vmem:[#allocation6 + $0x1f4] sm:$0xf]
    %v176 = vld [vmem:[#allocation6 + $0x1f8] sm:$0xf]
    %v177 = vld [vmem:[#allocation6 + $0x1fc] sm:$0xf]
    %v178 = vld [vmem:[%s3] sm:$0x1]
    %v180 = vlaneseq
    %v181 = vshrl.u32 %v180, 7
    %v182 = vsub.s32 0, %v181
    %v183 = vrot.slane %v178, %v182
    %v189 = vunpack.c.l.b16 %v46
    %v190 = vunpack.c.h.b16 %v46
    %v191 = vunpack.c.l.b16 %v47
    %v192 = vunpack.c.h.b16 %v47
    %v193 = vunpack.c.l.b16 %v48
    %v194 = vunpack.c.h.b16 %v48
    %v195 = vunpack.c.l.b16 %v49
    %v196 = vunpack.c.h.b16 %v49
    %v197 = vpack.c.b16 %v189, %v189
    %v198 = vpack.c.b16 %v190, %v190
    %v199 = vpack.c.b16 %v191, %v191
    %v200 = vpack.c.b16 %v192, %v192
    %v201 = vpack.c.b16 %v193, %v193
    %v202 = vpack.c.b16 %v194, %v194
    %v203 = vpack.c.b16 %v195, %v195
    %v204 = vpack.c.b16 %v196, %v196
    %v341 = vunpack.c.l.b16 %v50
    %v342 = vunpack.c.l.b16 %v51
    %v343 = vunpack.c.l.b16 %v52
    %v344 = vunpack.c.l.b16 %v53
    %v345 = vunpack.c.l.b16 %v54
    %v346 = vunpack.c.l.b16 %v55
    %v347 = vunpack.c.l.b16 %v56
    %v348 = vunpack.c.l.b16 %v57
    %v349 = vunpack.c.l.b16 %v58
    %v350 = vunpack.c.l.b16 %v59
    %v351 = vunpack.c.l.b16 %v60
    %v352 = vunpack.c.l.b16 %v61
    %v353 = vunpack.c.l.b16 %v62
    %v354 = vunpack.c.l.b16 %v63
    %v355 = vunpack.c.l.b16 %v64
    %v356 = vunpack.c.l.b16 %v65
    %v357 = vunpack.c.l.b16 %v66
    %v358 = vunpack.c.l.b16 %v67
    %v359 = vunpack.c.l.b16 %v68
    %v360 = vunpack.c.l.b16 %v69
    %v361 = vunpack.c.l.b16 %v70
    %v362 = vunpack.c.l.b16 %v71
    %v363 = vunpack.c.l.b16 %v72
    %v364 = vunpack.c.l.b16 %v73
    %v365 = vunpack.c.l.b16 %v74
    %v366 = vunpack.c.l.b16 %v75
    %v367 = vunpack.c.l.b16 %v76
    %v368 = vunpack.c.l.b16 %v77
    %v369 = vunpack.c.l.b16 %v78
    %v370 = vunpack.c.l.b16 %v79
    %v371 = vunpack.c.l.b16 %v80
    %v372 = vunpack.c.l.b16 %v81
    %v373 = vunpack.c.l.b16 %v82
    %v374 = vunpack.c.l.b16 %v83
    %v375 = vunpack.c.l.b16 %v84
    %v376 = vunpack.c.l.b16 %v85
    %v377 = vunpack.c.l.b16 %v86
    %v378 = vunpack.c.l.b16 %v87
    %v379 = vunpack.c.l.b16 %v88
    %v380 = vunpack.c.l.b16 %v89
    %v381 = vunpack.c.l.b16 %v90
    %v382 = vunpack.c.l.b16 %v91
    %v383 = vunpack.c.l.b16 %v92
    %v384 = vunpack.c.l.b16 %v93
    %v385 = vunpack.c.l.b16 %v94
    %v386 = vunpack.c.l.b16 %v95
    %v387 = vunpack.c.l.b16 %v96
    %v388 = vunpack.c.l.b16 %v97
    %v389 = vunpack.c.l.b16 %v98
    %v390 = vunpack.c.l.b16 %v99
    %v391 = vunpack.c.l.b16 %v100
    %v392 = vunpack.c.l.b16 %v101
    %v393 = vunpack.c.l.b16 %v102
    %v394 = vunpack.c.l.b16 %v103
    %v395 = vunpack.c.l.b16 %v104
    %v396 = vunpack.c.l.b16 %v105
    %v397 = vunpack.c.l.b16 %v106
    %v398 = vunpack.c.l.b16 %v107
    %v399 = vunpack.c.l.b16 %v108
    %v400 = vunpack.c.l.b16 %v109
    %v401 = vunpack.c.l.b16 %v110
    %v402 = vunpack.c.l.b16 %v111
    %v403 = vunpack.c.l.b16 %v112
    %v404 = vunpack.c.l.b16 %v113
    %v405 = vunpack.c.l.b16 %v114
    %v406 = vunpack.c.l.b16 %v115
    %v407 = vunpack.c.l.b16 %v116
    %v408 = vunpack.c.l.b16 %v117
    %v409 = vunpack.c.l.b16 %v118
    %v410 = vunpack.c.l.b16 %v119
    %v411 = vunpack.c.l.b16 %v120
    %v412 = vunpack.c.l.b16 %v121
    %v413 = vunpack.c.l.b16 %v122
    %v414 = vunpack.c.l.b16 %v123
    %v415 = vunpack.c.l.b16 %v124
    %v416 = vunpack.c.l.b16 %v125
    %v417 = vunpack.c.l.b16 %v126
    %v418 = vunpack.c.l.b16 %v127
    %v419 = vunpack.c.l.b16 %v128
    %v420 = vunpack.c.l.b16 %v129
    %v421 = vunpack.c.l.b16 %v130
    %v422 = vunpack.c.l.b16 %v131
    %v423 = vunpack.c.l.b16 %v132
    %v424 = vunpack.c.l.b16 %v133
    %v425 = vunpack.c.l.b16 %v134
    %v426 = vunpack.c.l.b16 %v135
    %v427 = vunpack.c.l.b16 %v136
    %v428 = vunpack.c.l.b16 %v137
    %v429 = vunpack.c.l.b16 %v138
    %v430 = vunpack.c.l.b16 %v139
    %v431 = vunpack.c.l.b16 %v140
    %v432 = vunpack.c.l.b16 %v141
    %v433 = vunpack.c.l.b16 %v142
    %v434 = vunpack.c.l.b16 %v143
    %v435 = vunpack.c.l.b16 %v144
    %v436 = vunpack.c.l.b16 %v145
    %v437 = vunpack.c.l.b16 %v146
    %v438 = vunpack.c.l.b16 %v147
    %v439 = vunpack.c.l.b16 %v148
    %v440 = vunpack.c.l.b16 %v149
    %v441 = vunpack.c.l.b16 %v150
    %v442 = vunpack.c.l.b16 %v151
    %v443 = vunpack.c.l.b16 %v152
    %v444 = vunpack.c.l.b16 %v153
    %v445 = vunpack.c.l.b16 %v154
    %v446 = vunpack.c.l.b16 %v155
    %v447 = vunpack.c.l.b16 %v156
    %v448 = vunpack.c.l.b16 %v157
    %v449 = vunpack.c.l.b16 %v158
    %v450 = vunpack.c.l.b16 %v159
    %v451 = vunpack.c.l.b16 %v160
    %v452 = vunpack.c.l.b16 %v161
    %v453 = vunpack.c.l.b16 %v162
    %v454 = vunpack.c.l.b16 %v163
    %v455 = vunpack.c.l.b16 %v164
    %v456 = vunpack.c.l.b16 %v165
    %v457 = vunpack.c.l.b16 %v166
    %v458 = vunpack.c.l.b16 %v167
    %v459 = vunpack.c.l.b16 %v168
    %v460 = vunpack.c.l.b16 %v169
    %v461 = vunpack.c.l.b16 %v170
    %v462 = vunpack.c.l.b16 %v171
    %v463 = vunpack.c.l.b16 %v172
    %v464 = vunpack.c.l.b16 %v173
    %v465 = vunpack.c.l.b16 %v174
    %v466 = vunpack.c.l.b16 %v175
    %v467 = vunpack.c.l.b16 %v176
    %v468 = vunpack.c.l.b16 %v177
    %v469 = vpack.c.b16 %v342, %v341
    %v470 = vpack.c.b16 %v344, %v343
    %v471 = vpack.c.b16 %v346, %v345
    %v472 = vpack.c.b16 %v348, %v347
    %v473 = vpack.c.b16 %v350, %v349
    %v474 = vpack.c.b16 %v352, %v351
    %v475 = vpack.c.b16 %v354, %v353
    %v476 = vpack.c.b16 %v356, %v355
    %v477 = vpack.c.b16 %v358, %v357
    %v478 = vpack.c.b16 %v360, %v359
    %v479 = vpack.c.b16 %v362, %v361
    %v480 = vpack.c.b16 %v364, %v363
    %v481 = vpack.c.b16 %v366, %v365
    %v482 = vpack.c.b16 %v368, %v367
    %v483 = vpack.c.b16 %v370, %v369
    %v484 = vpack.c.b16 %v372, %v371
    %v485 = vpack.c.b16 %v374, %v373
    %v486 = vpack.c.b16 %v376, %v375
    %v487 = vpack.c.b16 %v378, %v377
    %v488 = vpack.c.b16 %v380, %v379
    %v489 = vpack.c.b16 %v382, %v381
    %v490 = vpack.c.b16 %v384, %v383
    %v491 = vpack.c.b16 %v386, %v385
    %v492 = vpack.c.b16 %v388, %v387
    %v493 = vpack.c.b16 %v390, %v389
    %v494 = vpack.c.b16 %v392, %v391
    %v495 = vpack.c.b16 %v394, %v393
    %v496 = vpack.c.b16 %v396, %v395
    %v497 = vpack.c.b16 %v398, %v397
    %v498 = vpack.c.b16 %v400, %v399
    %v499 = vpack.c.b16 %v402, %v401
    %v500 = vpack.c.b16 %v404, %v403
    %v501 = vpack.c.b16 %v406, %v405
    %v502 = vpack.c.b16 %v408, %v407
    %v503 = vpack.c.b16 %v410, %v409
    %v504 = vpack.c.b16 %v412, %v411
    %v505 = vpack.c.b16 %v414, %v413
    %v506 = vpack.c.b16 %v416, %v415
    %v507 = vpack.c.b16 %v418, %v417
    %v508 = vpack.c.b16 %v420, %v419
    %v509 = vpack.c.b16 %v422, %v421
    %v510 = vpack.c.b16 %v424, %v423
    %v511 = vpack.c.b16 %v426, %v425
    %v512 = vpack.c.b16 %v428, %v427
    %v513 = vpack.c.b16 %v430, %v429
    %v514 = vpack.c.b16 %v432, %v431
    %v515 = vpack.c.b16 %v434, %v433
    %v516 = vpack.c.b16 %v436, %v435
    %v517 = vpack.c.b16 %v438, %v437
    %v518 = vpack.c.b16 %v440, %v439
    %v519 = vpack.c.b16 %v442, %v441
    %v520 = vpack.c.b16 %v444, %v443
    %v521 = vpack.c.b16 %v446, %v445
    %v522 = vpack.c.b16 %v448, %v447
    %v523 = vpack.c.b16 %v450, %v449
    %v524 = vpack.c.b16 %v452, %v451
    %v525 = vpack.c.b16 %v454, %v453
    %v526 = vpack.c.b16 %v456, %v455
    %v527 = vpack.c.b16 %v458, %v457
    %v528 = vpack.c.b16 %v460, %v459
    %v529 = vpack.c.b16 %v462, %v461
    %v530 = vpack.c.b16 %v464, %v463
    %v531 = vpack.c.b16 %v466, %v465
    %v532 = vpack.c.b16 %v468, %v467
    %597 = vmatprep.subr.bf16.mxu0 0
    %598 = vmatpush1.bf16.msra.mxu0 %v469
    %599 = vmatprep.subr.bf16.mxu0 0
    %600 = vmatpush1.bf16.msra.mxu0 %v470
    %601 = vmatprep.subr.bf16.mxu0 0
    %602 = vmatpush1.bf16.msra.mxu0 %v471
    %603 = vmatprep.subr.bf16.mxu0 0
    %604 = vmatpush1.bf16.msra.mxu0 %v472
    %605 = vmatprep.subr.bf16.mxu0 0
    %606 = vmatpush1.bf16.msra.mxu0 %v473
    %607 = vmatprep.subr.bf16.mxu0 0
    %608 = vmatpush1.bf16.msra.mxu0 %v474
    %609 = vmatprep.subr.bf16.mxu0 0
    %610 = vmatpush1.bf16.msra.mxu0 %v475
    %611 = vmatprep.subr.bf16.mxu0 0
    %612 = vmatpush1.bf16.msra.mxu0 %v476
    %613 = vmatprep.subr.bf16.mxu0 0
    %614 = vmatpush1.bf16.msra.mxu0 %v477
    %615 = vmatprep.subr.bf16.mxu0 0
    %616 = vmatpush1.bf16.msra.mxu0 %v478
    %617 = vmatprep.subr.bf16.mxu0 0
    %618 = vmatpush1.bf16.msra.mxu0 %v479
    %619 = vmatprep.subr.bf16.mxu0 0
    %620 = vmatpush1.bf16.msra.mxu0 %v480
    %621 = vmatprep.subr.bf16.mxu0 0
    %622 = vmatpush1.bf16.msra.mxu0 %v481
    %623 = vmatprep.subr.bf16.mxu0 0
    %624 = vmatpush1.bf16.msra.mxu0 %v482
    %625 = vmatprep.subr.bf16.mxu0 0
    %626 = vmatpush1.bf16.msra.mxu0 %v483
    %627 = vmatprep.subr.bf16.mxu0 0
    %628 = vmatpush1.bf16.msra.mxu0 %v484
    %629 = vmatprep.mubr.bf16.mxu0 %v198
    %630 = vmatmul.mubr.bf16.gmra.mrb[0].mxu0 %v197
    %v631 = vpop.f32.mrb[0].mxu0
    %v632 = vadd.f32 %v183, %v631
    %v633 = vpop.f32.mrb[0].mxu0
    %v634 = vpop.f32.mrb[0].mxu0
    %v635 = vpop.f32.mrb[0].mxu0
    %636 = vdwg.mxu0
    %637 = vmatprep.subr.bf16.mxu0 0
    %638 = vmatpush1.bf16.msra.mxu0 %v485
    %639 = vmatprep.subr.bf16.mxu0 0
    %640 = vmatpush1.bf16.msra.mxu0 %v486
    %641 = vmatprep.subr.bf16.mxu0 0
    %642 = vmatpush1.bf16.msra.mxu0 %v487
    %643 = vmatprep.subr.bf16.mxu0 0
    %644 = vmatpush1.bf16.msra.mxu0 %v488
    %645 = vmatprep.subr.bf16.mxu0 0
    %646 = vmatpush1.bf16.msra.mxu0 %v489
    %647 = vmatprep.subr.bf16.mxu0 0
    %648 = vmatpush1.bf16.msra.mxu0 %v490
    %649 = vmatprep.subr.bf16.mxu0 0
    %650 = vmatpush1.bf16.msra.mxu0 %v491
    %651 = vmatprep.subr.bf16.mxu0 0
    %652 = vmatpush1.bf16.msra.mxu0 %v492
    %653 = vmatprep.subr.bf16.mxu0 0
    %654 = vmatpush1.bf16.msra.mxu0 %v493
    %655 = vmatprep.subr.bf16.mxu0 0
    %656 = vmatpush1.bf16.msra.mxu0 %v494
    %657 = vmatprep.subr.bf16.mxu0 0
    %658 = vmatpush1.bf16.msra.mxu0 %v495
    %659 = vmatprep.subr.bf16.mxu0 0
    %660 = vmatpush1.bf16.msra.mxu0 %v496
    %661 = vmatprep.subr.bf16.mxu0 0
    %662 = vmatpush1.bf16.msra.mxu0 %v497
    %663 = vmatprep.subr.bf16.mxu0 0
    %664 = vmatpush1.bf16.msra.mxu0 %v498
    %665 = vmatprep.subr.bf16.mxu0 0
    %666 = vmatpush1.bf16.msra.mxu0 %v499
    %667 = vmatprep.subr.bf16.mxu0 0
    %668 = vmatpush1.bf16.msra.mxu0 %v500
    %669 = vmatprep.mubr.bf16.mxu0 %v200
    %670 = vmatmul.mubr.bf16.gmra.mrb[0].mxu0 %v199
    %v671 = vpop.f32.mrb[0].mxu0
    %v672 = vadd.f32 %v632, %v671
    %v673 = vpop.f32.mrb[0].mxu0
    %v674 = vpop.f32.mrb[0].mxu0
    %v675 = vpop.f32.mrb[0].mxu0
    %676 = vdwg.mxu0
    %677 = vmatprep.subr.bf16.mxu0 0
    %678 = vmatpush1.bf16.msra.mxu0 %v501
    %679 = vmatprep.subr.bf16.mxu0 0
    %680 = vmatpush1.bf16.msra.mxu0 %v502
    %681 = vmatprep.subr.bf16.mxu0 0
    %682 = vmatpush1.bf16.msra.mxu0 %v503
    %683 = vmatprep.subr.bf16.mxu0 0
    %684 = vmatpush1.bf16.msra.mxu0 %v504
    %685 = vmatprep.subr.bf16.mxu0 0
    %686 = vmatpush1.bf16.msra.mxu0 %v505
    %687 = vmatprep.subr.bf16.mxu0 0
    %688 = vmatpush1.bf16.msra.mxu0 %v506
    %689 = vmatprep.subr.bf16.mxu0 0
    %690 = vmatpush1.bf16.msra.mxu0 %v507
    %691 = vmatprep.subr.bf16.mxu0 0
    %692 = vmatpush1.bf16.msra.mxu0 %v508
    %693 = vmatprep.subr.bf16.mxu0 0
    %694 = vmatpush1.bf16.msra.mxu0 %v509
    %695 = vmatprep.subr.bf16.mxu0 0
    %696 = vmatpush1.bf16.msra.mxu0 %v510
    %697 = vmatprep.subr.bf16.mxu0 0
    %698 = vmatpush1.bf16.msra.mxu0 %v511
    %699 = vmatprep.subr.bf16.mxu0 0
    %700 = vmatpush1.bf16.msra.mxu0 %v512
    %701 = vmatprep.subr.bf16.mxu0 0
    %702 = vmatpush1.bf16.msra.mxu0 %v513
    %703 = vmatprep.subr.bf16.mxu0 0
    %704 = vmatpush1.bf16.msra.mxu0 %v514
    %705 = vmatprep.subr.bf16.mxu0 0
    %706 = vmatpush1.bf16.msra.mxu0 %v515
    %707 = vmatprep.subr.bf16.mxu0 0
    %708 = vmatpush1.bf16.msra.mxu0 %v516
    %709 = vmatprep.mubr.bf16.mxu0 %v202
    %710 = vmatmul.mubr.bf16.gmra.mrb[0].mxu0 %v201
    %v711 = vpop.f32.mrb[0].mxu0
    %v712 = vadd.f32 %v672, %v711
    %v713 = vpop.f32.mrb[0].mxu0
    %v714 = vpop.f32.mrb[0].mxu0
    %v715 = vpop.f32.mrb[0].mxu0
    %716 = vdwg.mxu0
    %717 = vmatprep.subr.bf16.mxu0 0
    %718 = vmatpush1.bf16.msra.mxu0 %v517
    %719 = vmatprep.subr.bf16.mxu0 0
    %720 = vmatpush1.bf16.msra.mxu0 %v518
    %721 = vmatprep.subr.bf16.mxu0 0
    %722 = vmatpush1.bf16.msra.mxu0 %v519
    %723 = vmatprep.subr.bf16.mxu0 0
    %724 = vmatpush1.bf16.msra.mxu0 %v520
    %725 = vmatprep.subr.bf16.mxu0 0
    %726 = vmatpush1.bf16.msra.mxu0 %v521
    %727 = vmatprep.subr.bf16.mxu0 0
    %728 = vmatpush1.bf16.msra.mxu0 %v522
    %729 = vmatprep.subr.bf16.mxu0 0
    %730 = vmatpush1.bf16.msra.mxu0 %v523
    %731 = vmatprep.subr.bf16.mxu0 0
    %732 = vmatpush1.bf16.msra.mxu0 %v524
    %733 = vmatprep.subr.bf16.mxu0 0
    %734 = vmatpush1.bf16.msra.mxu0 %v525
    %735 = vmatprep.subr.bf16.mxu0 0
    %736 = vmatpush1.bf16.msra.mxu0 %v526
    %737 = vmatprep.subr.bf16.mxu0 0
    %738 = vmatpush1.bf16.msra.mxu0 %v527
    %739 = vmatprep.subr.bf16.mxu0 0
    %740 = vmatpush1.bf16.msra.mxu0 %v528
    %741 = vmatprep.subr.bf16.mxu0 0
    %742 = vmatpush1.bf16.msra.mxu0 %v529
    %743 = vmatprep.subr.bf16.mxu0 0
    %744 = vmatpush1.bf16.msra.mxu0 %v530
    %745 = vmatprep.subr.bf16.mxu0 0
    %746 = vmatpush1.bf16.msra.mxu0 %v531
    %747 = vmatprep.subr.bf16.mxu0 0
    %748 = vmatpush1.bf16.msra.mxu0 %v532
    %749 = vmatprep.mubr.bf16.mxu0 %v204
    %750 = vmatmul.mubr.bf16.gmra.mrb[0].mxu0 %v203
    %v751 = vpop.f32.mrb[0].mxu0
    %v752 = vadd.f32 %v712, %v751
    %v753 = vpop.f32.mrb[0].mxu0
    %v754 = vpop.f32.mrb[0].mxu0
    %v755 = vpop.f32.mrb[0].mxu0
    %756 = vdwg.mxu0
    %s757 = sld [smem:[#allocation2]]
    %v758 = vstv %s757
    %v759 = vmul.f32 %v752, %v758
    %760 = vst [vmem:[#allocation8] sm:$0xff] %v759
    // Predicated region
    $region26: #{tpu_custom_call.1} parent=1 // pred_check
      _
    $region27: #{tpu_custom_call.1} parent=1 // pred_check_branch
      %762 = sbr.rel (0) target = $region29
    $region28: #{tpu_custom_call.1} parent=1 // pred_region
      %s764 = ssub.s32 128, 128
      %765 = vsyncadd [#allocation5], %s764
      %s767 = sshll.u32 [#allocation8], 4
      %s768 = int_to_ptr.vmem [resolvable:$true] %s767
      %770 = dma.vmem_to_hbm [thread:$0]  %s768, 128, %s4, [#allocation5]
    $region29: #{tpu_custom_call.1} parent=1 // pred_fallthru
      _
    // Predicated region
    $region30: #{tpu_custom_call.1} parent=1 // pred_check
      _
    $region31: #{tpu_custom_call.1} parent=1 // pred_check_branch
      %772 = sbr.rel (0) target = $region33
    $region32: #{tpu_custom_call.1} parent=1 // pred_region
      %773 = dma.done [#allocation5], 128
    $region33: #{tpu_custom_call.1} parent=1 // pred_fallthru
      _
    %774 = vsyncpa [#allocation4], 1
    %775 = vsyncpa [#allocation7], 1
    %776 = vsyncpa [#allocation5], 1

</llo_original>
